<compile_context>
chip_gen: v7x
topology: tpu7x:2x2x1
jax: 0.10.0
libtpu: 0.0.40
codegen_flags: <defaults>
</compile_context>

<pallas_src>
import jax
import jax.numpy as jnp
import numpy as np
from jax import lax
from jax.experimental import pallas as pl

# ----------------------------------------------------------------------------
# Configuration (scaled-down but architecture-consistent EEGNet)
# ----------------------------------------------------------------------------
B     = 2            # batch
C     = 4            # EEG electrodes (module default 6)
T     = 128          # time samples  (module default 18633)
F1    = 8
D     = 2
F1D   = F1 * D       # 16
F2    = 16
K1    = 17           # conv1 temporal kernel (module default 125; odd -> sym pad)
K2    = 16           # separableConv kernel (module default; even -> asym pad)
POOL1 = 4
POOL2 = 8
T1    = T // POOL1   # 32
T2    = T1 // POOL2  # 4
NCLS  = 2
EPS   = 0.0          # nn.BatchNorm2d(F, False): eps == False == 0.0

PAD1_L = (K1 - 1) // 2
PAD1_R = K1 - 1 - PAD1_L
PAD2_L = (K2 - 1) // 2          # torch padding='same', even kernel: left=(K-1)//2
PAD2_R = K2 - 1 - PAD2_L
TP1 = T + K1 - 1                # 144

BC   = B * C                    # 8   rows of the padded input slab
BF1D = B * F1D                  # 32  rows after the fused front conv
BF2  = B * F2                   # 32  rows after the separable conv

_HI = lax.Precision.HIGHEST     # used by the pure-JAX reference only

assert T % POOL1 == 0 and T1 % POOL2 == 0


def _elu(x):
    # ELU(alpha=1): x if x > 0 else exp(x) - 1 (clamped arg to avoid overflow)
    return jnp.where(x > 0, x, jnp.exp(jnp.minimum(x, 0.0)) - 1.0)


# ----------------------------------------------------------------------------
# Pallas kernel: full EEGNet forward, whole batch in one invocation.
# ----------------------------------------------------------------------------
def eegnet_kernel(xp_ref, wconv_ref, bconv_ref, p1m_ref, wsep_ref, bsep_ref,
                  p2m_ref, wdn_ref, sel_ref, bdn_ref, out_ref):
    # ---- im2col over the K1 conv1 taps (rows ordered k-major, then (b, c))
    xp = xp_ref[...]                                                   # (BC, TP1)
    xcol = jnp.concatenate([xp[:, k:k + T] for k in range(K1)], axis=0)  # (K1*BC, T)

    # ---- conv1 + BN1 + depthwiseConv + BN2 (folded, batch-block-diag) + ELU
    h2 = jnp.dot(wconv_ref[...], xcol, preferred_element_type=jnp.float32)
    h2 = _elu(h2 + bconv_ref[...])                                     # (BF1D, T)

    # ---- AvgPool2d((1, POOL1)) as matmul with a fixed pooling matrix
    p1 = jnp.dot(h2, p1m_ref[...], preferred_element_type=jnp.float32)  # (BF1D, T1)

    # ---- separableConv (1, K2) 'same' (asym pad 7/8) + BN3 (folded) + ELU
    p1p = jnp.concatenate(
        [jnp.zeros((BF1D, PAD2_L), jnp.float32), p1,
         jnp.zeros((BF1D, PAD2_R), jnp.float32)], axis=1)              # (BF1D, T1+K2-1)
    pcol = jnp.concatenate([p1p[:, k:k + T1] for k in range(K2)], axis=0)  # (K2*BF1D, T1)
    h3 = jnp.dot(wsep_ref[...], pcol, preferred_element_type=jnp.float32)
    h3 = _elu(h3 + bsep_ref[...])                                      # (BF2, T1)

    # ---- AvgPool2d((1, POOL2))
    p2 = jnp.dot(h3, p2m_ref[...], preferred_element_type=jnp.float32)  # (BF2, T2)

    # ---- flatten + Linear(F2*T2, NCLS): per-class multiply + lane-reduce,
    #      then one per-batch row-sum matmul against a selector matrix.
    g = jnp.concatenate(
        [jnp.sum(p2 * wdn_ref[n], axis=1, keepdims=True) for n in range(NCLS)],
        axis=1)                                                        # (BF2, NCLS)
    logits = jnp.dot(sel_ref[...], g,
                     preferred_element_type=jnp.float32) + bdn_ref[...]  # (B, NCLS)

    # ---- softmax(dim=1)
    m = jnp.max(logits, axis=-1, keepdims=True)
    e = jnp.exp(logits - m)
    out_ref[...] = e / jnp.sum(e, axis=-1, keepdims=True)


# ----------------------------------------------------------------------------
# Wrapper: layout plumbing + eval-mode constant folding of BN into conv weights
# ----------------------------------------------------------------------------
_COST = pl.CostEstimate(
    flops=2 * (BF1D * (K1 * BC) * T + BF1D * T * T1 + BF2 * (K2 * BF1D) * T1
               + BF2 * T1 * T2 + BF2 * T2 * NCLS + B * BF2 * NCLS),
    transcendentals=BF1D * T + BF2 * T1 + B * NCLS,
    bytes_accessed=4 * (BC * TP1 + BF1D * (K1 * BC) + BF1D + T * T1
                        + BF2 * (K2 * BF1D) + BF2 + T1 * T2
                        + NCLS * BF2 * T2 + B * BF2 + NCLS + B * NCLS),
)


def _fold_inputs(x, params):
    # x: (B, 1, C, T) NCHW, like the PyTorch module.
    xp = jnp.pad(x[:, 0], ((0, 0), (0, 0), (PAD1_L, PAD1_R))).reshape(BC, TP1)

    w1, wd, ws = params['w1'], params['wd'], params['ws']
    s1, b1 = params['s1'], params['b1']
    s2, b2 = params['s2'], params['b2']
    s3, b3 = params['s3'], params['b3']

    f_of = jnp.arange(F1D) // D                       # depthwise out-ch -> F1 group
    # fold conv1 + BN1 + depthwise + BN2:
    #   h2[o, t] = sum_{c,k} wfull[o,c,k] * xpad[c, t+k] + bfull[o]
    wfull = (s2[:, None, None] * s1[f_of][:, None, None]
             * wd[:, :, None] * w1[f_of][:, None, :])                   # (F1D, C, K1)
    bfull = s2 * b1[f_of] * jnp.sum(wd, axis=1) + b2                    # (F1D,)

    eye_b = jnp.eye(B, dtype=jnp.float32)
    # batch-block-diagonal weights; column order matches the kernel's im2col rows
    wconv = jnp.einsum('bp,ock->bokpc', eye_b, wfull).reshape(BF1D, K1 * BC)
    bconv = jnp.tile(bfull, (B,)).reshape(BF1D, 1)

    wsep = jnp.einsum('bp,fok->bfkpo', eye_b,
                      s3[:, None, None] * ws).reshape(BF2, K2 * BF1D)
    bsep = jnp.tile(b3, (B,)).reshape(BF2, 1)

    # exact average-pool matrices (stride == window, divisible lengths)
    p1m = (jnp.arange(T)[:, None] // POOL1 ==
           jnp.arange(T1)[None, :]).astype(jnp.float32) / POOL1         # (T, T1)
    p2m = (jnp.arange(T1)[:, None] // POOL2 ==
           jnp.arange(T2)[None, :]).astype(jnp.float32) / POOL2         # (T1, T2)

    # dense weight in flatten order (f2-major, t2-minor), tiled over batch rows,
    # plus a per-batch row-sum selector matrix.
    wdn = jnp.tile(params['Wdense'].reshape(NCLS, 1, F2, T2),
                   (1, B, 1, 1)).reshape(NCLS, BF2, T2)
    sel = jnp.repeat(jnp.eye(B, dtype=jnp.float32), F2, axis=1)         # (B, BF2)
    bdn = params['bdense'][None, :]                                     # (1, NCLS)
    return xp, wconv, bconv, p1m, wsep, bsep, p2m, wdn, sel, bdn


@jax.jit
def eegnet_forward(x, params):
    args = _fold_inputs(x, params)
    return pl.pallas_call(
        eegnet_kernel,
        out_shape=jax.ShapeDtypeStruct((B, NCLS), jnp.float32),
        cost_estimate=_COST,
    )(*args)


# ----------------------------------------------------------------------------
# Deterministic parameters (synthetic; BN folded to scale/shift, eps=0)
# ----------------------------------------------------------------------------
def make_params(key):
    ks = jax.random.split(key, 8)

    def rnorm(k, shape, scale):
        return scale * jax.random.normal(k, shape, dtype=jnp.float32)

    w1 = rnorm(ks[0], (F1, K1), 0.3)        # Conv2d(1, F1, (1,K1)) weight (squeezed)
    wd = rnorm(ks[1], (F1D, C), 0.3)        # depthwise Conv2d weight (squeezed)
    ws = rnorm(ks[2], (F2, F1D, K2), 0.15)  # separable Conv2d weight (squeezed)
    Wdense = rnorm(ks[3], (NCLS, F2 * T2), 0.2)
    bdense = rnorm(ks[4], (NCLS,), 0.1)

    def bn_params(k, n):
        kg, kb, km, kv = jax.random.split(k, 4)
        gamma = 1.0 + 0.1 * jax.random.normal(kg, (n,), dtype=jnp.float32)
        beta = 0.1 * jax.random.normal(kb, (n,), dtype=jnp.float32)
        mean = 0.1 * jax.random.normal(km, (n,), dtype=jnp.float32)
        var = 0.5 + jax.random.uniform(kv, (n,), dtype=jnp.float32)
        scale = gamma / jnp.sqrt(var + EPS)
        return scale, beta - mean * scale

    s1, b1 = bn_params(ks[5], F1)
    s2, b2 = bn_params(ks[6], F1D)
    s3, b3 = bn_params(ks[7], F2)

    return dict(w1=w1, wd=wd, ws=ws, Wdense=Wdense, bdense=bdense,
                s1=s1, b1=b1, s2=s2, b2=b2, s3=s3, b3=b3)


# ----------------------------------------------------------------------------
# Pure-JAX reference (mirrors PyTorch NCHW semantics) for validation
# ----------------------------------------------------------------------------
def eegnet_reference(x, params):
    dn = ('NCHW', 'OIHW', 'NCHW')
    h = lax.conv_general_dilated(
        x, params['w1'][:, None, None, :], (1, 1),
        ((0, 0), (PAD1_L, PAD1_R)), dimension_numbers=dn, precision=_HI)
    h = h * params['s1'][None, :, None, None] + params['b1'][None, :, None, None]
    h = lax.conv_general_dilated(
        h, params['wd'][:, None, :, None], (1, 1),
        ((0, 0), (0, 0)), dimension_numbers=dn,
        feature_group_count=F1, precision=_HI)
    h = h * params['s2'][None, :, None, None] + params['b2'][None, :, None, None]
    h = _elu(h)
    h = h.reshape(B, F1D, 1, T1, POOL1).mean(-1)
    h = lax.conv_general_dilated(
        h, params['ws'][:, :, None, :], (1, 1),
        ((0, 0), (PAD2_L, PAD2_R)), dimension_numbers=dn, precision=_HI)
    h = h * params['s3'][None, :, None, None] + params['b3'][None, :, None, None]
    h = _elu(h)
    h = h.reshape(B, F2, 1, T2, POOL2).mean(-1)
    flat = h.reshape(B, -1)
    logits = flat @ params['Wdense'].T + params['bdense'][None, :]
    return jax.nn.softmax(logits, axis=1)


if __name__ == "__main__":
    key = jax.random.PRNGKey(0)
    kx, kp = jax.random.split(key)
    x = jax.random.normal(kx, (B, 1, C, T), dtype=jnp.float32)   # NCHW like PyTorch
    params = make_params(kp)

    out = jax.block_until_ready(eegnet_forward(x, params))

    ref = eegnet_reference(x, params)
    # Kernel matmuls use default (single bf16 pass) MXU precision; the reference
    # is HIGHEST-precision f32, so allow bf16-level tolerance on the softmax.
    np.testing.assert_allclose(np.asarray(out), np.asarray(ref),
                               rtol=1e-2, atol=5e-3)
    assert out.shape == (B, NCLS)
    print("KERNEL_OK")
</pallas_src>

<mosaic_0001>
module attributes {stable_mosaic.version = 11 : i64} {
  func.func @eegnet_kernel(%arg0: memref<8x144xf32, #tpu.memory_space<vmem>>, %arg1: memref<32x136xf32, #tpu.memory_space<vmem>>, %arg2: memref<32x1xf32, #tpu.memory_space<vmem>>, %arg3: memref<128x32xf32, #tpu.memory_space<vmem>>, %arg4: memref<32x512xf32, #tpu.memory_space<vmem>>, %arg5: memref<32x1xf32, #tpu.memory_space<vmem>>, %arg6: memref<32x4xf32, #tpu.memory_space<vmem>>, %arg7: memref<2x32x4xf32, #tpu.memory_space<vmem>>, %arg8: memref<2x32xf32, #tpu.memory_space<vmem>>, %arg9: memref<1x2xf32, #tpu.memory_space<vmem>>, %arg10: memref<2x2xf32, #tpu.memory_space<vmem>>) attributes {dimension_semantics = [], scalar_prefetch = 0 : i64, scratch_operands = 0 : i64, tpu.core_type = #tpu.core_type<tc>} {
    %c0 = arith.constant 0 : index
    %c0_0 = arith.constant 0 : index
    %0 = vector.load %arg0[%c0, %c0_0] : memref<8x144xf32, #tpu.memory_space<vmem>>, vector<8x144xf32>
    %1 = vector.extract_strided_slice %0 {offsets = [0, 0], sizes = [8, 128], strides = [1, 1]} : vector<8x144xf32> to vector<8x128xf32>
    %2 = vector.extract_strided_slice %0 {offsets = [0, 1], sizes = [8, 128], strides = [1, 1]} : vector<8x144xf32> to vector<8x128xf32>
    %3 = vector.extract_strided_slice %0 {offsets = [0, 2], sizes = [8, 128], strides = [1, 1]} : vector<8x144xf32> to vector<8x128xf32>
    %4 = vector.extract_strided_slice %0 {offsets = [0, 3], sizes = [8, 128], strides = [1, 1]} : vector<8x144xf32> to vector<8x128xf32>
    %5 = vector.extract_strided_slice %0 {offsets = [0, 4], sizes = [8, 128], strides = [1, 1]} : vector<8x144xf32> to vector<8x128xf32>
    %6 = vector.extract_strided_slice %0 {offsets = [0, 5], sizes = [8, 128], strides = [1, 1]} : vector<8x144xf32> to vector<8x128xf32>
    %7 = vector.extract_strided_slice %0 {offsets = [0, 6], sizes = [8, 128], strides = [1, 1]} : vector<8x144xf32> to vector<8x128xf32>
    %8 = vector.extract_strided_slice %0 {offsets = [0, 7], sizes = [8, 128], strides = [1, 1]} : vector<8x144xf32> to vector<8x128xf32>
    %9 = vector.extract_strided_slice %0 {offsets = [0, 8], sizes = [8, 128], strides = [1, 1]} : vector<8x144xf32> to vector<8x128xf32>
    %10 = vector.extract_strided_slice %0 {offsets = [0, 9], sizes = [8, 128], strides = [1, 1]} : vector<8x144xf32> to vector<8x128xf32>
    %11 = vector.extract_strided_slice %0 {offsets = [0, 10], sizes = [8, 128], strides = [1, 1]} : vector<8x144xf32> to vector<8x128xf32>
    %12 = vector.extract_strided_slice %0 {offsets = [0, 11], sizes = [8, 128], strides = [1, 1]} : vector<8x144xf32> to vector<8x128xf32>
    %13 = vector.extract_strided_slice %0 {offsets = [0, 12], sizes = [8, 128], strides = [1, 1]} : vector<8x144xf32> to vector<8x128xf32>
    %14 = vector.extract_strided_slice %0 {offsets = [0, 13], sizes = [8, 128], strides = [1, 1]} : vector<8x144xf32> to vector<8x128xf32>
    %15 = vector.extract_strided_slice %0 {offsets = [0, 14], sizes = [8, 128], strides = [1, 1]} : vector<8x144xf32> to vector<8x128xf32>
    %16 = vector.extract_strided_slice %0 {offsets = [0, 15], sizes = [8, 128], strides = [1, 1]} : vector<8x144xf32> to vector<8x128xf32>
    %17 = vector.extract_strided_slice %0 {offsets = [0, 16], sizes = [8, 128], strides = [1, 1]} : vector<8x144xf32> to vector<8x128xf32>
    %18 = tpu.concatenate %1, %2, %3, %4, %5, %6, %7, %8, %9, %10, %11, %12, %13, %14, %15, %16 in 0 : vector<8x128xf32>, vector<8x128xf32>, vector<8x128xf32>, vector<8x128xf32>, vector<8x128xf32>, vector<8x128xf32>, vector<8x128xf32>, vector<8x128xf32>, vector<8x128xf32>, vector<8x128xf32>, vector<8x128xf32>, vector<8x128xf32>, vector<8x128xf32>, vector<8x128xf32>, vector<8x128xf32>, vector<8x128xf32> -> vector<128x128xf32>
    %19 = tpu.concatenate %18, %17 in 0 : vector<128x128xf32>, vector<8x128xf32> -> vector<136x128xf32>
    %c0_1 = arith.constant 0 : index
    %c0_2 = arith.constant 0 : index
    %20 = vector.load %arg1[%c0_1, %c0_2] : memref<32x136xf32, #tpu.memory_space<vmem>>, vector<32x136xf32>
    %cst = arith.constant dense<0.000000e+00> : vector<32x128xf32>
    %21 = tpu.matmul %20, %19, %cst {dimension_numbers = #tpu.dot_dimension_numbers<[1], [0], [0], [1], [0, 0, 1, 1], [], []>} : vector<32x136xf32>, vector<136x128xf32>, vector<32x128xf32> -> vector<32x128xf32>
    %c0_3 = arith.constant 0 : index
    %c0_4 = arith.constant 0 : index
    %22 = vector.load %arg2[%c0_3, %c0_4] : memref<32x1xf32, #tpu.memory_space<vmem>>, vector<32x1xf32>
    %23 = vector.broadcast %22 : vector<32x1xf32> to vector<32x128xf32>
    %24 = arith.addf %21, %23 : vector<32x128xf32>
    %cst_5 = arith.constant 0.000000e+00 : f32
    %25 = vector.broadcast %cst_5 : f32 to vector<32x128xf32>
    %26 = arith.cmpf ogt, %24, %25 : vector<32x128xf32>
    %cst_6 = arith.constant 0.000000e+00 : f32
    %27 = vector.broadcast %cst_6 : f32 to vector<32x128xf32>
    %28 = arith.minimumf %24, %27 : vector<32x128xf32>
    %29 = math.exp %28 : vector<32x128xf32>
    %cst_7 = arith.constant 1.000000e+00 : f32
    %30 = vector.broadcast %cst_7 : f32 to vector<32x128xf32>
    %31 = arith.subf %29, %30 : vector<32x128xf32>
    %32 = arith.select %26, %24, %31 : vector<32x128xi1>, vector<32x128xf32>
    %c0_8 = arith.constant 0 : index
    %c0_9 = arith.constant 0 : index
    %33 = vector.load %arg3[%c0_8, %c0_9] : memref<128x32xf32, #tpu.memory_space<vmem>>, vector<128x32xf32>
    %cst_10 = arith.constant dense<0.000000e+00> : vector<32x32xf32>
    %34 = tpu.matmul %32, %33, %cst_10 {dimension_numbers = #tpu.dot_dimension_numbers<[1], [0], [0], [1], [0, 0, 1, 1], [], []>} : vector<32x128xf32>, vector<128x32xf32>, vector<32x32xf32> -> vector<32x32xf32>
    %cst_11 = arith.constant 0.000000e+00 : f32
    %35 = vector.broadcast %cst_11 : f32 to vector<32x7xf32>
    %cst_12 = arith.constant 0.000000e+00 : f32
    %36 = vector.broadcast %cst_12 : f32 to vector<32x8xf32>
    %37 = tpu.concatenate %35, %34, %36 in 1 : vector<32x7xf32>, vector<32x32xf32>, vector<32x8xf32> -> vector<32x47xf32>
    %38 = vector.extract_strided_slice %37 {offsets = [0, 0], sizes = [32, 32], strides = [1, 1]} : vector<32x47xf32> to vector<32x32xf32>
    %39 = vector.extract_strided_slice %37 {offsets = [0, 1], sizes = [32, 32], strides = [1, 1]} : vector<32x47xf32> to vector<32x32xf32>
    %40 = vector.extract_strided_slice %37 {offsets = [0, 2], sizes = [32, 32], strides = [1, 1]} : vector<32x47xf32> to vector<32x32xf32>
    %41 = vector.extract_strided_slice %37 {offsets = [0, 3], sizes = [32, 32], strides = [1, 1]} : vector<32x47xf32> to vector<32x32xf32>
    %42 = vector.extract_strided_slice %37 {offsets = [0, 4], sizes = [32, 32], strides = [1, 1]} : vector<32x47xf32> to vector<32x32xf32>
    %43 = vector.extract_strided_slice %37 {offsets = [0, 5], sizes = [32, 32], strides = [1, 1]} : vector<32x47xf32> to vector<32x32xf32>
    %44 = vector.extract_strided_slice %37 {offsets = [0, 6], sizes = [32, 32], strides = [1, 1]} : vector<32x47xf32> to vector<32x32xf32>
    %45 = vector.extract_strided_slice %37 {offsets = [0, 7], sizes = [32, 32], strides = [1, 1]} : vector<32x47xf32> to vector<32x32xf32>
    %46 = vector.extract_strided_slice %37 {offsets = [0, 8], sizes = [32, 32], strides = [1, 1]} : vector<32x47xf32> to vector<32x32xf32>
    %47 = vector.extract_strided_slice %37 {offsets = [0, 9], sizes = [32, 32], strides = [1, 1]} : vector<32x47xf32> to vector<32x32xf32>
    %48 = vector.extract_strided_slice %37 {offsets = [0, 10], sizes = [32, 32], strides = [1, 1]} : vector<32x47xf32> to vector<32x32xf32>
    %49 = vector.extract_strided_slice %37 {offsets = [0, 11], sizes = [32, 32], strides = [1, 1]} : vector<32x47xf32> to vector<32x32xf32>
    %50 = vector.extract_strided_slice %37 {offsets = [0, 12], sizes = [32, 32], strides = [1, 1]} : vector<32x47xf32> to vector<32x32xf32>
    %51 = vector.extract_strided_slice %37 {offsets = [0, 13], sizes = [32, 32], strides = [1, 1]} : vector<32x47xf32> to vector<32x32xf32>
    %52 = vector.extract_strided_slice %37 {offsets = [0, 14], sizes = [32, 32], strides = [1, 1]} : vector<32x47xf32> to vector<32x32xf32>
    %53 = vector.extract_strided_slice %37 {offsets = [0, 15], sizes = [32, 32], strides = [1, 1]} : vector<32x47xf32> to vector<32x32xf32>
    %54 = tpu.concatenate %38, %39, %40, %41, %42, %43, %44, %45, %46, %47, %48, %49, %50, %51, %52, %53 in 0 : vector<32x32xf32>, vector<32x32xf32>, vector<32x32xf32>, vector<32x32xf32>, vector<32x32xf32>, vector<32x32xf32>, vector<32x32xf32>, vector<32x32xf32>, vector<32x32xf32>, vector<32x32xf32>, vector<32x32xf32>, vector<32x32xf32>, vector<32x32xf32>, vector<32x32xf32>, vector<32x32xf32>, vector<32x32xf32> -> vector<512x32xf32>
    %c0_13 = arith.constant 0 : index
    %c0_14 = arith.constant 0 : index
    %55 = vector.load %arg4[%c0_13, %c0_14] : memref<32x512xf32, #tpu.memory_space<vmem>>, vector<32x512xf32>
    %cst_15 = arith.constant dense<0.000000e+00> : vector<32x32xf32>
    %56 = tpu.matmul %55, %54, %cst_15 {dimension_numbers = #tpu.dot_dimension_numbers<[1], [0], [0], [1], [0, 0, 1, 1], [], []>} : vector<32x512xf32>, vector<512x32xf32>, vector<32x32xf32> -> vector<32x32xf32>
    %c0_16 = arith.constant 0 : index
    %c0_17 = arith.constant 0 : index
    %57 = vector.load %arg5[%c0_16, %c0_17] : memref<32x1xf32, #tpu.memory_space<vmem>>, vector<32x1xf32>
    %58 = vector.broadcast %57 : vector<32x1xf32> to vector<32x32xf32>
    %59 = arith.addf %56, %58 : vector<32x32xf32>
    %cst_18 = arith.constant 0.000000e+00 : f32
    %60 = vector.broadcast %cst_18 : f32 to vector<32x32xf32>
    %61 = arith.cmpf ogt, %59, %60 : vector<32x32xf32>
    %cst_19 = arith.constant 0.000000e+00 : f32
    %62 = vector.broadcast %cst_19 : f32 to vector<32x32xf32>
    %63 = arith.minimumf %59, %62 : vector<32x32xf32>
    %64 = math.exp %63 : vector<32x32xf32>
    %cst_20 = arith.constant 1.000000e+00 : f32
    %65 = vector.broadcast %cst_20 : f32 to vector<32x32xf32>
    %66 = arith.subf %64, %65 : vector<32x32xf32>
    %67 = arith.select %61, %59, %66 : vector<32x32xi1>, vector<32x32xf32>
    %c0_21 = arith.constant 0 : index
    %c0_22 = arith.constant 0 : index
    %68 = vector.load %arg6[%c0_21, %c0_22] : memref<32x4xf32, #tpu.memory_space<vmem>>, vector<32x4xf32>
    %cst_23 = arith.constant dense<0.000000e+00> : vector<32x4xf32>
    %69 = tpu.matmul %67, %68, %cst_23 {dimension_numbers = #tpu.dot_dimension_numbers<[1], [0], [0], [1], [0, 0, 1, 1], [], []>} : vector<32x32xf32>, vector<32x4xf32>, vector<32x4xf32> -> vector<32x4xf32>
    %c0_24 = arith.constant 0 : index
    %c0_25 = arith.constant 0 : index
    %c0_26 = arith.constant 0 : index
    %70 = vector.load %arg7[%c0_24, %c0_25, %c0_26] : memref<2x32x4xf32, #tpu.memory_space<vmem>>, vector<1x32x4xf32>
    %71 = vector.shape_cast %70 : vector<1x32x4xf32> to vector<32x4xf32>
    %72 = arith.mulf %69, %71 : vector<32x4xf32>
    %cst_27 = arith.constant dense<0.000000e+00> : vector<32xf32>
    %73 = vector.multi_reduction <add>, %72, %cst_27 [1] : vector<32x4xf32> to vector<32xf32>
    %74 = vector.shape_cast %73 : vector<32xf32> to vector<32x1xf32>
    %c1 = arith.constant 1 : index
    %c0_28 = arith.constant 0 : index
    %c0_29 = arith.constant 0 : index
    %75 = vector.load %arg7[%c1, %c0_28, %c0_29] : memref<2x32x4xf32, #tpu.memory_space<vmem>>, vector<1x32x4xf32>
    %76 = vector.shape_cast %75 : vector<1x32x4xf32> to vector<32x4xf32>
    %77 = arith.mulf %69, %76 : vector<32x4xf32>
    %cst_30 = arith.constant dense<0.000000e+00> : vector<32xf32>
    %78 = vector.multi_reduction <add>, %77, %cst_30 [1] : vector<32x4xf32> to vector<32xf32>
    %79 = vector.shape_cast %78 : vector<32xf32> to vector<32x1xf32>
    %80 = tpu.concatenate %74, %79 in 1 : vector<32x1xf32>, vector<32x1xf32> -> vector<32x2xf32>
    %c0_31 = arith.constant 0 : index
    %c0_32 = arith.constant 0 : index
    %81 = vector.load %arg8[%c0_31, %c0_32] : memref<2x32xf32, #tpu.memory_space<vmem>>, vector<2x32xf32>
    %cst_33 = arith.constant dense<0.000000e+00> : vector<2x2xf32>
    %82 = tpu.matmul %81, %80, %cst_33 {dimension_numbers = #tpu.dot_dimension_numbers<[1], [0], [0], [1], [0, 0, 1, 1], [], []>} : vector<2x32xf32>, vector<32x2xf32>, vector<2x2xf32> -> vector<2x2xf32>
    %c0_34 = arith.constant 0 : index
    %c0_35 = arith.constant 0 : index
    %83 = vector.load %arg9[%c0_34, %c0_35] : memref<1x2xf32, #tpu.memory_space<vmem>>, vector<1x2xf32>
    %84 = vector.broadcast %83 : vector<1x2xf32> to vector<2x2xf32>
    %85 = arith.addf %82, %84 : vector<2x2xf32>
    %cst_36 = arith.constant dense<0xFF800000> : vector<2xf32>
    %86 = vector.multi_reduction <maximumf>, %85, %cst_36 [1] : vector<2x2xf32> to vector<2xf32>
    %87 = vector.shape_cast %86 : vector<2xf32> to vector<2x1xf32>
    %88 = vector.broadcast %87 : vector<2x1xf32> to vector<2x2xf32>
    %89 = arith.subf %85, %88 : vector<2x2xf32>
    %90 = math.exp %89 : vector<2x2xf32>
    %cst_37 = arith.constant dense<0.000000e+00> : vector<2xf32>
    %91 = vector.multi_reduction <add>, %90, %cst_37 [1] : vector<2x2xf32> to vector<2xf32>
    %92 = vector.shape_cast %91 : vector<2xf32> to vector<2x1xf32>
    %93 = vector.broadcast %92 : vector<2x1xf32> to vector<2x2xf32>
    %94 = arith.divf %90, %93 : vector<2x2xf32>
    %c0_38 = arith.constant 0 : index
    %c0_39 = arith.constant 0 : index
    %95 = vector.load %arg10[%c0_38, %c0_39] : memref<2x2xf32, #tpu.memory_space<vmem>>, vector<2x2xf32>
    tpu.vector_store %arg10[%c0_38, %c0_39], %94 {strides = array<i32>} : memref<2x2xf32, #tpu.memory_space<vmem>>, vector<2x2xf32>,
    return
  }
}

</mosaic_0001>

<llo_original>
// kernel: mul.0
$region0: #{mul.0}
  #allocation0 [shape = 's32[1]{0}', space=sflag, size = 0x4, scoped, tag = 'scoped memory for mul.0']
  %s0 = inlined_call_operand.vmem [shape: f32[16], index: 0, kind: input, shape index: {}]
  %s1 = inlined_call_operand.vmem [shape: f32[16], index: 1, kind: input, shape index: {}]
  %s2 = inlined_call_operand.vmem [shape: f32[16], index: 2, kind: output, shape index: {}]
  %v3 = vld [vmem:[%s0] sm:$0x1]
  %v4 = vld [vmem:[%s1] sm:$0x1]
  %5 = xla_tuple %v3, %v4
  %6 = xla_tuple %5
  %v7 = vmul.f32 %v3, %v4
  %8 = xla_tuple %v7
  %9 = vst [vmem:[%s2] sm:$0x1] %v7

// kernel: tile.17
$region0: #{tile.17}
  #allocation0 [shape = 's32[1]{0}', space=sflag, size = 0x4, scoped, tag = 'scoped memory for tile.17']
  %s0 = inlined_call_operand.vmem [shape: f32[16], index: 0, kind: input, shape index: {}]
  %s1 = inlined_call_operand.vmem [shape: f32[2,16], index: 1, kind: output, shape index: {}]
  // Predicated region
  $region2: #{tile.17} parent=0 // pred_check
    _
  $region3: #{tile.17} parent=0 // pred_check_branch
    %3 = sbr.rel (0) target = $region5
  $region4: #{tile.17} parent=0 // pred_region
    _
  $region5: #{tile.17} parent=0 // pred_fallthru
    _
  %v4 = vld [vmem:[%s0] ss:$0 sm:$0xff]
  %5 = vst [vmem:[%s1] sm:$0x3] %v4

// kernel: tile.0
$region0: #{tile.0}
  %s0 = inlined_call_operand.vmem [shape: f32[2,16], index: 0, kind: input, shape index: {}]
  %s1 = inlined_call_operand.vmem [shape: f32[32,1], index: 1, kind: output, shape index: {}]
  $region1: #{tile.0} parent=0
    #allocation0 [shape = 'u8[4096]{0}', space=vmem, size = 0x1000, scoped, tag = 'scoped mem for input reshape']
    %s3 = sshllo.u32 0, 2
    %v4 = vld [vmem:[%s0] sm:%s3]
    %5 = vst [vmem:[#allocation0] sm:%s3] %v4
    %v6 = vld [vmem:[#allocation0] sm:$0x3]
    %vm7 = vcmask 7168
    %8 = vst.msk [vmem:[%s1] ss:$16 sm:$0x3] %vm7, %v6
    %v9 = vld [vmem:[#allocation0] sm:$0x3]
    %10 = vrot.lane.b32.xlu0 %v9, 127
    %v11 = vpop.permute.xlu0 %10
    %vm12 = vcmask 7168
    %s13 = scalar_lea.vmem %s1, 1
    %14 = vst.msk [vmem:[%s13] ss:$16 sm:$0x3] %vm12, %v11
    %v15 = vld [vmem:[#allocation0] sm:$0x3]
    %16 = vrot.lane.b32.xlu0 %v15, 126
    %v17 = vpop.permute.xlu0 %16
    %vm18 = vcmask 7168
    %s19 = scalar_lea.vmem %s1, 2
    %20 = vst.msk [vmem:[%s19] ss:$16 sm:$0x3] %vm18, %v17
    %v21 = vld [vmem:[#allocation0] sm:$0x3]
    %22 = vrot.lane.b32.xlu0 %v21, 125
    %v23 = vpop.permute.xlu0 %22
    %vm24 = vcmask 7168
    %s25 = scalar_lea.vmem %s1, 3
    %26 = vst.msk [vmem:[%s25] ss:$16 sm:$0x3] %vm24, %v23
    %v27 = vld [vmem:[#allocation0] sm:$0x3]
    %28 = vrot.lane.b32.xlu0 %v27, 124
    %v29 = vpop.permute.xlu0 %28
    %vm30 = vcmask 7168
    %s31 = scalar_lea.vmem %s1, 4
    %32 = vst.msk [vmem:[%s31] ss:$16 sm:$0x3] %vm30, %v29
    %v33 = vld [vmem:[#allocation0] sm:$0x3]
    %34 = vrot.lane.b32.xlu0 %v33, 123
    %v35 = vpop.permute.xlu0 %34
    %vm36 = vcmask 7168
    %s37 = scalar_lea.vmem %s1, 5
    %38 = vst.msk [vmem:[%s37] ss:$16 sm:$0x3] %vm36, %v35
    %v39 = vld [vmem:[#allocation0] sm:$0x3]
    %40 = vrot.lane.b32.xlu0 %v39, 122
    %v41 = vpop.permute.xlu0 %40
    %vm42 = vcmask 7168
    %s43 = scalar_lea.vmem %s1, 6
    %44 = vst.msk [vmem:[%s43] ss:$16 sm:$0x3] %vm42, %v41
    %v45 = vld [vmem:[#allocation0] sm:$0x3]
    %46 = vrot.lane.b32.xlu0 %v45, 121
    %v47 = vpop.permute.xlu0 %46
    %vm48 = vcmask 7168
    %s49 = scalar_lea.vmem %s1, 7
    %50 = vst.msk [vmem:[%s49] ss:$16 sm:$0x3] %vm48, %v47
    %v51 = vld [vmem:[#allocation0] sm:$0x3]
    %52 = vrot.lane.b32.xlu0 %v51, 120
    %v53 = vpop.permute.xlu0 %52
    %vm54 = vcmask 7168
    %s55 = scalar_lea.vmem %s1, 8
    %56 = vst.msk [vmem:[%s55] ss:$16 sm:$0x3] %vm54, %v53
    %v57 = vld [vmem:[#allocation0] sm:$0x3]
    %58 = vrot.lane.b32.xlu0 %v57, 119
    %v59 = vpop.permute.xlu0 %58
    %vm60 = vcmask 7168
    %s61 = scalar_lea.vmem %s1, 9
    %62 = vst.msk [vmem:[%s61] ss:$16 sm:$0x3] %vm60, %v59
    %v63 = vld [vmem:[#allocation0] sm:$0x3]
    %64 = vrot.lane.b32.xlu0 %v63, 118
    %v65 = vpop.permute.xlu0 %64
    %vm66 = vcmask 7168
    %s67 = scalar_lea.vmem %s1, 10
    %68 = vst.msk [vmem:[%s67] ss:$16 sm:$0x3] %vm66, %v65
    %v69 = vld [vmem:[#allocation0] sm:$0x3]
    %70 = vrot.lane.b32.xlu0 %v69, 117
    %v71 = vpop.permute.xlu0 %70
    %vm72 = vcmask 7168
    %s73 = scalar_lea.vmem %s1, 11
    %74 = vst.msk [vmem:[%s73] ss:$16 sm:$0x3] %vm72, %v71
    %v75 = vld [vmem:[#allocation0] sm:$0x3]
    %76 = vrot.lane.b32.xlu0 %v75, 116
    %v77 = vpop.permute.xlu0 %76
    %vm78 = vcmask 7168
    %s79 = scalar_lea.vmem %s1, 12
    %80 = vst.msk [vmem:[%s79] ss:$16 sm:$0x3] %vm78, %v77
    %v81 = vld [vmem:[#allocation0] sm:$0x3]
    %82 = vrot.lane.b32.xlu0 %v81, 115
    %v83 = vpop.permute.xlu0 %82
    %vm84 = vcmask 7168
    %s85 = scalar_lea.vmem %s1, 13
    %86 = vst.msk [vmem:[%s85] ss:$16 sm:$0x3] %vm84, %v83
    %v87 = vld [vmem:[#allocation0] sm:$0x3]
    %88 = vrot.lane.b32.xlu0 %v87, 114
    %v89 = vpop.permute.xlu0 %88
    %vm90 = vcmask 7168
    %s91 = scalar_lea.vmem %s1, 14
    %92 = vst.msk [vmem:[%s91] ss:$16 sm:$0x3] %vm90, %v89
    %v93 = vld [vmem:[#allocation0] sm:$0x3]
    %94 = vrot.lane.b32.xlu0 %v93, 113
    %v95 = vpop.permute.xlu0 %94
    %vm96 = vcmask 7168
    %s97 = scalar_lea.vmem %s1, 15
    %98 = vst.msk [vmem:[%s97] ss:$16 sm:$0x3] %vm96, %v95

// kernel: eegnet_forward.1
$region0: #{eegnet_forward.1}
  #allocation0 [shape = 'u32[]', space=smem, size = 0x4, offset = 0x4, fixed_abs, tag = 'smem constant byte address 0x4 - core index']
  #allocation1 [shape = 'u32[144,128]{1,0:T(1,128)}', space=vmem, size = 0x12000, scoped, tag = 'internal scratch']
  %s0 = inlined_call_operand.vmem [shape: f32[8,144], index: 0, kind: input, shape index: {}]
  %s1 = inlined_call_operand.vmem [shape: f32[32,136], index: 1, kind: input, shape index: {}]
  %s2 = inlined_call_operand.vmem [shape: f32[32,1], index: 2, kind: input, shape index: {}]
  %s3 = inlined_call_operand.vmem [shape: f32[128,32], index: 3, kind: input, shape index: {}]
  %s4 = inlined_call_operand.vmem [shape: f32[32,512], index: 4, kind: input, shape index: {}]
  %s5 = inlined_call_operand.vmem [shape: f32[32,1], index: 5, kind: input, shape index: {}]
  %s6 = inlined_call_operand.vmem [shape: f32[32,4], index: 6, kind: input, shape index: {}]
  %s7 = inlined_call_operand.vmem [shape: f32[2,32,4], index: 7, kind: input, shape index: {}]
  %s8 = inlined_call_operand.vmem [shape: f32[2,32], index: 8, kind: input, shape index: {}]
  %s9 = inlined_call_operand.vmem [shape: f32[1,2], index: 9, kind: input, shape index: {}]
  %s10 = inlined_call_operand.hbm [shape: f32[2,2], index: 10, kind: output, shape index: {}]
  %s11 = sld [smem:[#allocation0]]
  $region50: #{eegnet_forward.1} parent=0
    _
  %s13 = ssub.s32 1, %s11
  %s14 = scalar_select 0, %s13, %s11
  $region1: #{eegnet_forward.1} parent=0
    #allocation2 [shape = 'u8[1024]{0}', space=vmem, size = 0x400, scoped, tag = 'output window, operand 0, single buffered']
    #allocation3 [shape = 's32[1]{0}', space=sflag, size = 0x4, scoped, tag = 'scoped memory for eegnet_forward.1']
    %15 = vsyncpa [#allocation3], 0
    // Predicated region
    $region2: #{eegnet_forward.1} parent=1 // pred_check
      _
    $region3: #{eegnet_forward.1} parent=1 // pred_check_branch
      %17 = sbr.rel (0) target = $region5
    $region4: #{eegnet_forward.1} parent=1 // pred_region
      _
    $region5: #{eegnet_forward.1} parent=1 // pred_fallthru
      _
    // Predicated region
    $region6: #{eegnet_forward.1} parent=1 // pred_check
      _
    $region7: #{eegnet_forward.1} parent=1 // pred_check_branch
      %19 = sbr.rel (0) target = $region9
    $region8: #{eegnet_forward.1} parent=1 // pred_region
      _
    $region9: #{eegnet_forward.1} parent=1 // pred_fallthru
      _
    // Predicated region
    $region10: #{eegnet_forward.1} parent=1 // pred_check
      _
    $region11: #{eegnet_forward.1} parent=1 // pred_check_branch
      %21 = sbr.rel (0) target = $region13
    $region12: #{eegnet_forward.1} parent=1 // pred_region
      _
    $region13: #{eegnet_forward.1} parent=1 // pred_fallthru
      _
    // Predicated region
    $region14: #{eegnet_forward.1} parent=1 // pred_check
      _
    $region15: #{eegnet_forward.1} parent=1 // pred_check_branch
      %23 = sbr.rel (0) target = $region17
    $region16: #{eegnet_forward.1} parent=1 // pred_region
      _
    $region17: #{eegnet_forward.1} parent=1 // pred_fallthru
      _
    // Predicated region
    $region18: #{eegnet_forward.1} parent=1 // pred_check
      _
    $region19: #{eegnet_forward.1} parent=1 // pred_check_branch
      %25 = sbr.rel (0) target = $region21
    $region20: #{eegnet_forward.1} parent=1 // pred_region
      _
    $region21: #{eegnet_forward.1} parent=1 // pred_fallthru
      _
    // Predicated region
    $region22: #{eegnet_forward.1} parent=1 // pred_check
      _
    $region23: #{eegnet_forward.1} parent=1 // pred_check_branch
      %27 = sbr.rel (0) target = $region25
    $region24: #{eegnet_forward.1} parent=1 // pred_region
      _
    $region25: #{eegnet_forward.1} parent=1 // pred_fallthru
      _
    // Predicated region
    $region26: #{eegnet_forward.1} parent=1 // pred_check
      _
    $region27: #{eegnet_forward.1} parent=1 // pred_check_branch
      %29 = sbr.rel (0) target = $region29
    $region28: #{eegnet_forward.1} parent=1 // pred_region
      _
    $region29: #{eegnet_forward.1} parent=1 // pred_fallthru
      _
    // Predicated region
    $region30: #{eegnet_forward.1} parent=1 // pred_check
      _
    $region31: #{eegnet_forward.1} parent=1 // pred_check_branch
      %31 = sbr.rel (0) target = $region33
    $region32: #{eegnet_forward.1} parent=1 // pred_region
      _
    $region33: #{eegnet_forward.1} parent=1 // pred_fallthru
      _
    // Predicated region
    $region34: #{eegnet_forward.1} parent=1 // pred_check
      _
    $region35: #{eegnet_forward.1} parent=1 // pred_check_branch
      %33 = sbr.rel (0) target = $region37
    $region36: #{eegnet_forward.1} parent=1 // pred_region
      _
    $region37: #{eegnet_forward.1} parent=1 // pred_fallthru
      _
    // Predicated region
    $region38: #{eegnet_forward.1} parent=1 // pred_check
      _
    $region39: #{eegnet_forward.1} parent=1 // pred_check_branch
      %35 = sbr.rel (0) target = $region41
    $region40: #{eegnet_forward.1} parent=1 // pred_region
      _
    $region41: #{eegnet_forward.1} parent=1 // pred_fallthru
      _
    %v36 = vld [vmem:[%s0] sm:$0xff]
    %v37 = vld [vmem:[%s0 + $0x8] sm:$0xff]
    %40 = vrot.lane.b32.xlu0 %v36, 127
    %v41 = vpop.permute.xlu0 %40
    %42 = vrot.lane.b32.xlu0 %v37, 127
    %v43 = vpop.permute.xlu0 %42
    %vm44 = vcmask 1039360
    %v45 = vsel %vm44, %v41, %v43
    %47 = vrot.lane.b32.xlu0 %v36, 126
    %v48 = vpop.permute.xlu0 %47
    %49 = vrot.lane.b32.xlu0 %v37, 126
    %v50 = vpop.permute.xlu0 %49
    %vm51 = vcmask 1031168
    %v52 = vsel %vm51, %v48, %v50
    %54 = vrot.lane.b32.xlu0 %v36, 125
    %v55 = vpop.permute.xlu0 %54
    %56 = vrot.lane.b32.xlu0 %v37, 125
    %v57 = vpop.permute.xlu0 %56
    %vm58 = vcmask 1022976
    %v59 = vsel %vm58, %v55, %v57
    %61 = vrot.lane.b32.xlu0 %v36, 124
    %v62 = vpop.permute.xlu0 %61
    %63 = vrot.lane.b32.xlu0 %v37, 124
    %v64 = vpop.permute.xlu0 %63
    %vm65 = vcmask 1014784
    %v66 = vsel %vm65, %v62, %v64
    %68 = vrot.lane.b32.xlu0 %v36, 123
    %v69 = vpop.permute.xlu0 %68
    %70 = vrot.lane.b32.xlu0 %v37, 123
    %v71 = vpop.permute.xlu0 %70
    %vm72 = vcmask 1006592
    %v73 = vsel %vm72, %v69, %v71
    %75 = vrot.lane.b32.xlu0 %v36, 122
    %v76 = vpop.permute.xlu0 %75
    %77 = vrot.lane.b32.xlu0 %v37, 122
    %v78 = vpop.permute.xlu0 %77
    %vm79 = vcmask 998400
    %v80 = vsel %vm79, %v76, %v78
    %82 = vrot.lane.b32.xlu0 %v36, 121
    %v83 = vpop.permute.xlu0 %82
    %84 = vrot.lane.b32.xlu0 %v37, 121
    %v85 = vpop.permute.xlu0 %84
    %vm86 = vcmask 990208
    %v87 = vsel %vm86, %v83, %v85
    %89 = vrot.lane.b32.xlu0 %v36, 120
    %v90 = vpop.permute.xlu0 %89
    %91 = vrot.lane.b32.xlu0 %v37, 120
    %v92 = vpop.permute.xlu0 %91
    %vm93 = vcmask 982016
    %v94 = vsel %vm93, %v90, %v92
    %96 = vrot.lane.b32.xlu0 %v36, 119
    %v97 = vpop.permute.xlu0 %96
    %98 = vrot.lane.b32.xlu0 %v37, 119
    %v99 = vpop.permute.xlu0 %98
    %vm100 = vcmask 973824
    %v101 = vsel %vm100, %v97, %v99
    %103 = vrot.lane.b32.xlu0 %v36, 118
    %v104 = vpop.permute.xlu0 %103
    %105 = vrot.lane.b32.xlu0 %v37, 118
    %v106 = vpop.permute.xlu0 %105
    %vm107 = vcmask 965632
    %v108 = vsel %vm107, %v104, %v106
    %110 = vrot.lane.b32.xlu0 %v36, 117
    %v111 = vpop.permute.xlu0 %110
    %112 = vrot.lane.b32.xlu0 %v37, 117
    %v113 = vpop.permute.xlu0 %112
    %vm114 = vcmask 957440
    %v115 = vsel %vm114, %v111, %v113
    %117 = vrot.lane.b32.xlu0 %v36, 116
    %v118 = vpop.permute.xlu0 %117
    %119 = vrot.lane.b32.xlu0 %v37, 116
    %v120 = vpop.permute.xlu0 %119
    %vm121 = vcmask 949248
    %v122 = vsel %vm121, %v118, %v120
    %124 = vrot.lane.b32.xlu0 %v36, 115
    %v125 = vpop.permute.xlu0 %124
    %126 = vrot.lane.b32.xlu0 %v37, 115
    %v127 = vpop.permute.xlu0 %126
    %vm128 = vcmask 941056
    %v129 = vsel %vm128, %v125, %v127
    %131 = vrot.lane.b32.xlu0 %v36, 114
    %v132 = vpop.permute.xlu0 %131
    %133 = vrot.lane.b32.xlu0 %v37, 114
    %v134 = vpop.permute.xlu0 %133
    %vm135 = vcmask 932864
    %v136 = vsel %vm135, %v132, %v134
    %138 = vrot.lane.b32.xlu0 %v36, 113
    %v139 = vpop.permute.xlu0 %138
    %140 = vrot.lane.b32.xlu0 %v37, 113
    %v141 = vpop.permute.xlu0 %140
    %vm142 = vcmask 924672
    %v143 = vsel %vm142, %v139, %v141
    %145 = vrot.lane.b32.xlu0 %v36, 112
    %v146 = vpop.permute.xlu0 %145
    %147 = vrot.lane.b32.xlu0 %v37, 112
    %v148 = vpop.permute.xlu0 %147
    %vm149 = vcmask 916480
    %v150 = vsel %vm149, %v146, %v148
    %v152 = vld [vmem:[%s1] sm:$0xff]
    %v153 = vld [vmem:[%s1 + $0x8] sm:$0xff]
    %v154 = vld [vmem:[%s1 + $0x10] sm:$0xff]
    %v155 = vld [vmem:[%s1 + $0x18] sm:$0xff]
    %v156 = vld [vmem:[%s1 + $0x20] sm:$0xff]
    %v157 = vld [vmem:[%s1 + $0x28] sm:$0xff]
    %v158 = vld [vmem:[%s1 + $0x30] sm:$0xff]
    %v159 = vld [vmem:[%s1 + $0x38] sm:$0xff]
    %v160 = vld [vmem:[%s2] sm:$0xff]
    %v161 = vld [vmem:[%s2 + $0x8] sm:$0xff]
    %v162 = vld [vmem:[%s2 + $0x10] sm:$0xff]
    %v163 = vld [vmem:[%s2 + $0x18] sm:$0xff]
    %165 = vset.pattern.permute.xlu0 0
    %166 = vperm.xlu0 %165, %v160
    %v167 = vpop.permute.xlu0 %166
    %170 = vset.pattern.permute.xlu0 0
    %171 = vperm.xlu0 %170, %v161
    %v172 = vpop.permute.xlu0 %171
    %175 = vset.pattern.permute.xlu0 0
    %176 = vperm.xlu0 %175, %v162
    %v177 = vpop.permute.xlu0 %176
    %180 = vset.pattern.permute.xlu0 0
    %181 = vperm.xlu0 %180, %v163
    %v182 = vpop.permute.xlu0 %181
    %vm184 = vcmask 64512
    %v186 = vsel %vm184, %v153, 0
    %v189 = vsel %vm184, %v155, 0
    %v192 = vsel %vm184, %v157, 0
    %v195 = vsel %vm184, %v159, 0
    %197 = vmatprep.subr.mxu0 0.0
    %198 = vmatpush1.msra.mxu0 %v36
    %199 = vmatprep.subr.mxu0 0.0
    %200 = vmatpush1.msra.mxu0 %v45
    %201 = vmatprep.subr.mxu0 0.0
    %202 = vmatpush1.msra.mxu0 %v52
    %203 = vmatprep.subr.mxu0 0.0
    %204 = vmatpush1.msra.mxu0 %v59
    %205 = vmatprep.subr.mxu0 0.0
    %206 = vmatpush1.msra.mxu0 %v66
    %207 = vmatprep.subr.mxu0 0.0
    %208 = vmatpush1.msra.mxu0 %v73
    %209 = vmatprep.subr.mxu0 0.0
    %210 = vmatpush1.msra.mxu0 %v80
    %211 = vmatprep.subr.mxu0 0.0
    %212 = vmatpush1.msra.mxu0 %v87
    %213 = vmatprep.subr.mxu0 0.0
    %214 = vmatpush1.msra.mxu0 %v94
    %215 = vmatprep.subr.mxu0 0.0
    %216 = vmatpush1.msra.mxu0 %v101
    %217 = vmatprep.subr.mxu0 0.0
    %218 = vmatpush1.msra.mxu0 %v108
    %219 = vmatprep.subr.mxu0 0.0
    %220 = vmatpush1.msra.mxu0 %v115
    %221 = vmatprep.subr.mxu0 0.0
    %222 = vmatpush1.msra.mxu0 %v122
    %223 = vmatprep.subr.mxu0 0.0
    %224 = vmatpush1.msra.mxu0 %v129
    %225 = vmatprep.subr.mxu0 0.0
    %226 = vmatpush1.msra.mxu0 %v136
    %227 = vmatprep.subr.mxu0 0.0
    %228 = vmatpush1.msra.mxu0 %v143
    %229 = vmatprep.subr.mxu0 0.0
    %230 = vmatpush1.msra.mxu0 %v150
    %231 = vmatprep.subr.mxu0 0.0
    %232 = vmatpush1.msra.mxu0 0.0
    %233 = vmatprep.subr.mxu0 0.0
    %234 = vmatpush1.msra.mxu0 0.0
    %235 = vmatprep.subr.mxu0 0.0
    %236 = vmatpush1.msra.mxu0 0.0
    %237 = vmatprep.subr.mxu0 0.0
    %238 = vmatpush1.msra.mxu0 0.0
    %239 = vmatprep.subr.mxu0 0.0
    %240 = vmatpush1.msra.mxu0 0.0
    %241 = vmatprep.subr.mxu0 0.0
    %242 = vmatpush1.msra.mxu0 0.0
    %243 = vmatprep.subr.mxu0 0.0
    %244 = vmatpush1.msra.mxu0 0.0
    %245 = vmatprep.subr.mxu0 0.0
    %246 = vmatpush1.msra.mxu0 0.0
    %247 = vmatprep.subr.mxu0 0.0
    %248 = vmatpush1.msra.mxu0 0.0
    %249 = vmatprep.subr.mxu0 0.0
    %250 = vmatpush1.msra.mxu0 0.0
    %251 = vmatprep.subr.mxu0 0.0
    %252 = vmatpush1.msra.mxu0 0.0
    %253 = vmatprep.subr.mxu0 0.0
    %254 = vmatpush1.msra.mxu0 0.0
    %255 = vmatprep.subr.mxu0 0.0
    %256 = vmatpush1.msra.mxu0 0.0
    %257 = vmatprep.subr.mxu0 0.0
    %258 = vmatpush1.msra.mxu0 0.0
    %259 = vmatprep.subr.mxu0 0.0
    %260 = vmatpush1.msra.mxu0 0.0
    %261 = vmatprep.mubr.f32.mxu0 %v186
    %262 = vmatmul.mubr.f32.gmra.mrb[0].mxu0 %v152
    %v263 = vpop.f32.mrb[0].mxu0
    %v264 = vadd.f32 %v167, %v263
    %v265 = vpop.f32.mrb[0].mxu0
    %266 = vmatprep.mubr.f32.mxu0 %v189
    %267 = vmatmul.mubr.f32.gmra.mrb[0].mxu0 %v154
    %v268 = vpop.f32.mrb[0].mxu0
    %v269 = vadd.f32 %v172, %v268
    %v270 = vpop.f32.mrb[0].mxu0
    %271 = vmatprep.mubr.f32.mxu0 %v192
    %272 = vmatmul.mubr.f32.gmra.mrb[0].mxu0 %v156
    %v273 = vpop.f32.mrb[0].mxu0
    %v274 = vadd.f32 %v177, %v273
    %v275 = vpop.f32.mrb[0].mxu0
    %276 = vmatprep.mubr.f32.mxu0 %v195
    %277 = vmatmul.mubr.f32.gmra.mrb[0].mxu0 %v158
    %v278 = vpop.f32.mrb[0].mxu0
    %v279 = vadd.f32 %v182, %v278
    %v280 = vpop.f32.mrb[0].mxu0
    %281 = vdwg.mxu0
    %vm282 = vcmp.gt.f32.partialorder %v264, 0.0
    %vm283 = vcmp.gt.f32.partialorder %v269, 0.0
    %vm284 = vcmp.gt.f32.partialorder %v274, 0.0
    %vm285 = vcmp.gt.f32.partialorder %v279, 0.0
    %v286 = vmin.f32 %v264, 0.0
    %v287 = vmin.f32 %v269, 0.0
    %v288 = vmin.f32 %v274, 0.0
    %v289 = vmin.f32 %v279, 0.0
    %v290 = vmul.f32 %v286, 1.442695
    %v291 = vpow.pop %v290
    %v292 = vmul.f32 %v287, 1.442695
    %v293 = vpow.pop %v292
    %v294 = vmul.f32 %v288, 1.442695
    %v295 = vpow.pop %v294
    %v296 = vmul.f32 %v289, 1.442695
    %v297 = vpow.pop %v296
    %v298 = vsub.f32 %v291, 1.0
    %v299 = vsub.f32 %v293, 1.0
    %v300 = vsub.f32 %v295, 1.0
    %v301 = vsub.f32 %v297, 1.0
    %v302 = vsel %vm282, %v264, %v298
    %v303 = vsel %vm283, %v269, %v299
    %v304 = vsel %vm284, %v274, %v300
    %v305 = vsel %vm285, %v279, %v301
    %v306 = vld [vmem:[%s3] sm:$0xff]
    %v307 = vld [vmem:[%s3 + $0x8] sm:$0xff]
    %v308 = vld [vmem:[%s3 + $0x10] sm:$0xff]
    %v309 = vld [vmem:[%s3 + $0x18] sm:$0xff]
    %v310 = vld [vmem:[%s3 + $0x20] sm:$0xff]
    %v311 = vld [vmem:[%s3 + $0x28] sm:$0xff]
    %v312 = vld [vmem:[%s3 + $0x30] sm:$0xff]
    %v313 = vld [vmem:[%s3 + $0x38] sm:$0xff]
    %v314 = vld [vmem:[%s3 + $0x40] sm:$0xff]
    %v315 = vld [vmem:[%s3 + $0x48] sm:$0xff]
    %v316 = vld [vmem:[%s3 + $0x50] sm:$0xff]
    %v317 = vld [vmem:[%s3 + $0x58] sm:$0xff]
    %v318 = vld [vmem:[%s3 + $0x60] sm:$0xff]
    %v319 = vld [vmem:[%s3 + $0x68] sm:$0xff]
    %v320 = vld [vmem:[%s3 + $0x70] sm:$0xff]
    %v321 = vld [vmem:[%s3 + $0x78] sm:$0xff]
    %322 = vmatprep.subr.mxu0 0.0
    %323 = vmatpush1.msra.mxu0 %v306
    %324 = vmatprep.subr.mxu0 0.0
    %325 = vmatpush1.msra.mxu0 %v307
    %326 = vmatprep.subr.mxu0 0.0
    %327 = vmatpush1.msra.mxu0 %v308
    %328 = vmatprep.subr.mxu0 0.0
    %329 = vmatpush1.msra.mxu0 %v309
    %330 = vmatprep.subr.mxu0 0.0
    %331 = vmatpush1.msra.mxu0 %v310
    %332 = vmatprep.subr.mxu0 0.0
    %333 = vmatpush1.msra.mxu0 %v311
    %334 = vmatprep.subr.mxu0 0.0
    %335 = vmatpush1.msra.mxu0 %v312
    %336 = vmatprep.subr.mxu0 0.0
    %337 = vmatpush1.msra.mxu0 %v313
    %338 = vmatprep.subr.mxu0 0.0
    %339 = vmatpush1.msra.mxu0 %v314
    %340 = vmatprep.subr.mxu0 0.0
    %341 = vmatpush1.msra.mxu0 %v315
    %342 = vmatprep.subr.mxu0 0.0
    %343 = vmatpush1.msra.mxu0 %v316
    %344 = vmatprep.subr.mxu0 0.0
    %345 = vmatpush1.msra.mxu0 %v317
    %346 = vmatprep.subr.mxu0 0.0
    %347 = vmatpush1.msra.mxu0 %v318
    %348 = vmatprep.subr.mxu0 0.0
    %349 = vmatpush1.msra.mxu0 %v319
    %350 = vmatprep.subr.mxu0 0.0
    %351 = vmatpush1.msra.mxu0 %v320
    %352 = vmatprep.subr.mxu0 0.0
    %353 = vmatpush1.msra.mxu0 %v321
    %354 = vmatprep.subr.mxu0 0.0
    %355 = vmatpush1.msra.mxu0 0.0
    %356 = vmatprep.subr.mxu0 0.0
    %357 = vmatpush1.msra.mxu0 0.0
    %358 = vmatprep.subr.mxu0 0.0
    %359 = vmatpush1.msra.mxu0 0.0
    %360 = vmatprep.subr.mxu0 0.0
    %361 = vmatpush1.msra.mxu0 0.0
    %362 = vmatprep.subr.mxu0 0.0
    %363 = vmatpush1.msra.mxu0 0.0
    %364 = vmatprep.subr.mxu0 0.0
    %365 = vmatpush1.msra.mxu0 0.0
    %366 = vmatprep.subr.mxu0 0.0
    %367 = vmatpush1.msra.mxu0 0.0
    %368 = vmatprep.subr.mxu0 0.0
    %369 = vmatpush1.msra.mxu0 0.0
    %370 = vmatprep.subr.mxu0 0.0
    %371 = vmatpush1.msra.mxu0 0.0
    %372 = vmatprep.subr.mxu0 0.0
    %373 = vmatpush1.msra.mxu0 0.0
    %374 = vmatprep.subr.mxu0 0.0
    %375 = vmatpush1.msra.mxu0 0.0
    %376 = vmatprep.subr.mxu0 0.0
    %377 = vmatpush1.msra.mxu0 0.0
    %378 = vmatprep.subr.mxu0 0.0
    %379 = vmatpush1.msra.mxu0 0.0
    %380 = vmatprep.subr.mxu0 0.0
    %381 = vmatpush1.msra.mxu0 0.0
    %382 = vmatprep.subr.mxu0 0.0
    %383 = vmatpush1.msra.mxu0 0.0
    %384 = vmatprep.subr.mxu0 0.0
    %385 = vmatpush1.msra.mxu0 0.0
    %386 = vmatprep.mubr.f32.mxu0 0.0
    %387 = vmatmul.mubr.f32.gmra.mrb[0].mxu0 %v302
    %v388 = vpop.f32.mrb[0].mxu0
    %v389 = vadd.f32 0.0, %v388
    %v390 = vpop.f32.mrb[0].mxu0
    %391 = vmatprep.mubr.f32.mxu0 0.0
    %392 = vmatmul.mubr.f32.gmra.mrb[0].mxu0 %v303
    %v393 = vpop.f32.mrb[0].mxu0
    %v394 = vadd.f32 0.0, %v393
    %v395 = vpop.f32.mrb[0].mxu0
    %396 = vmatprep.mubr.f32.mxu0 0.0
    %397 = vmatmul.mubr.f32.gmra.mrb[0].mxu0 %v304
    %v398 = vpop.f32.mrb[0].mxu0
    %v399 = vadd.f32 0.0, %v398
    %v400 = vpop.f32.mrb[0].mxu0
    %401 = vmatprep.mubr.f32.mxu0 0.0
    %402 = vmatmul.mubr.f32.gmra.mrb[0].mxu0 %v305
    %v403 = vpop.f32.mrb[0].mxu0
    %v404 = vadd.f32 0.0, %v403
    %v405 = vpop.f32.mrb[0].mxu0
    %406 = vdwg.mxu0
    %411 = vrot.lane.b32.xlu0 %v389, 7
    %v412 = vpop.permute.xlu0 %411
    %413 = vrot.lane.b32.xlu0 %v394, 7
    %v414 = vpop.permute.xlu0 %413
    %415 = vrot.lane.b32.xlu0 %v399, 7
    %v416 = vpop.permute.xlu0 %415
    %417 = vrot.lane.b32.xlu0 %v404, 7
    %v418 = vpop.permute.xlu0 %417
    %vm423 = vcmask 56320
    %v424 = vsel %vm423, 0.0, %v412
    %v425 = vsel %vm423, 0.0, %v414
    %v426 = vsel %vm423, 0.0, %v416
    %v427 = vsel %vm423, 0.0, %v418
    %vm428 = vcmask 318464
    %v429 = vsel %vm428, %v424, 0.0
    %v430 = vsel %vm428, %v425, 0.0
    %v431 = vsel %vm428, %v426, 0.0
    %v432 = vsel %vm428, %v427, 0.0
    %437 = vrot.lane.b32.xlu0 %v429, 127
    %v438 = vpop.permute.xlu0 %437
    %439 = vrot.lane.b32.xlu0 %v430, 127
    %v440 = vpop.permute.xlu0 %439
    %441 = vrot.lane.b32.xlu0 %v431, 127
    %v442 = vpop.permute.xlu0 %441
    %443 = vrot.lane.b32.xlu0 %v432, 127
    %v444 = vpop.permute.xlu0 %443
    %449 = vrot.lane.b32.xlu0 %v429, 126
    %v450 = vpop.permute.xlu0 %449
    %451 = vrot.lane.b32.xlu0 %v430, 126
    %v452 = vpop.permute.xlu0 %451
    %453 = vrot.lane.b32.xlu0 %v431, 126
    %v454 = vpop.permute.xlu0 %453
    %455 = vrot.lane.b32.xlu0 %v432, 126
    %v456 = vpop.permute.xlu0 %455
    %461 = vrot.lane.b32.xlu0 %v429, 125
    %v462 = vpop.permute.xlu0 %461
    %463 = vrot.lane.b32.xlu0 %v430, 125
    %v464 = vpop.permute.xlu0 %463
    %465 = vrot.lane.b32.xlu0 %v431, 125
    %v466 = vpop.permute.xlu0 %465
    %467 = vrot.lane.b32.xlu0 %v432, 125
    %v468 = vpop.permute.xlu0 %467
    %473 = vrot.lane.b32.xlu0 %v429, 124
    %v474 = vpop.permute.xlu0 %473
    %475 = vrot.lane.b32.xlu0 %v430, 124
    %v476 = vpop.permute.xlu0 %475
    %477 = vrot.lane.b32.xlu0 %v431, 124
    %v478 = vpop.permute.xlu0 %477
    %479 = vrot.lane.b32.xlu0 %v432, 124
    %v480 = vpop.permute.xlu0 %479
    %485 = vrot.lane.b32.xlu0 %v429, 123
    %v486 = vpop.permute.xlu0 %485
    %487 = vrot.lane.b32.xlu0 %v430, 123
    %v488 = vpop.permute.xlu0 %487
    %489 = vrot.lane.b32.xlu0 %v431, 123
    %v490 = vpop.permute.xlu0 %489
    %491 = vrot.lane.b32.xlu0 %v432, 123
    %v492 = vpop.permute.xlu0 %491
    %497 = vrot.lane.b32.xlu0 %v429, 122
    %v498 = vpop.permute.xlu0 %497
    %499 = vrot.lane.b32.xlu0 %v430, 122
    %v500 = vpop.permute.xlu0 %499
    %501 = vrot.lane.b32.xlu0 %v431, 122
    %v502 = vpop.permute.xlu0 %501
    %503 = vrot.lane.b32.xlu0 %v432, 122
    %v504 = vpop.permute.xlu0 %503
    %509 = vrot.lane.b32.xlu0 %v429, 121
    %v510 = vpop.permute.xlu0 %509
    %511 = vrot.lane.b32.xlu0 %v430, 121
    %v512 = vpop.permute.xlu0 %511
    %513 = vrot.lane.b32.xlu0 %v431, 121
    %v514 = vpop.permute.xlu0 %513
    %515 = vrot.lane.b32.xlu0 %v432, 121
    %v516 = vpop.permute.xlu0 %515
    %521 = vrot.lane.b32.xlu0 %v429, 120
    %v522 = vpop.permute.xlu0 %521
    %523 = vrot.lane.b32.xlu0 %v430, 120
    %v524 = vpop.permute.xlu0 %523
    %525 = vrot.lane.b32.xlu0 %v431, 120
    %v526 = vpop.permute.xlu0 %525
    %527 = vrot.lane.b32.xlu0 %v432, 120
    %v528 = vpop.permute.xlu0 %527
    %533 = vrot.lane.b32.xlu0 %v429, 119
    %v534 = vpop.permute.xlu0 %533
    %535 = vrot.lane.b32.xlu0 %v430, 119
    %v536 = vpop.permute.xlu0 %535
    %537 = vrot.lane.b32.xlu0 %v431, 119
    %v538 = vpop.permute.xlu0 %537
    %539 = vrot.lane.b32.xlu0 %v432, 119
    %v540 = vpop.permute.xlu0 %539
    %545 = vrot.lane.b32.xlu0 %v429, 118
    %v546 = vpop.permute.xlu0 %545
    %547 = vrot.lane.b32.xlu0 %v430, 118
    %v548 = vpop.permute.xlu0 %547
    %549 = vrot.lane.b32.xlu0 %v431, 118
    %v550 = vpop.permute.xlu0 %549
    %551 = vrot.lane.b32.xlu0 %v432, 118
    %v552 = vpop.permute.xlu0 %551
    %557 = vrot.lane.b32.xlu0 %v429, 117
    %v558 = vpop.permute.xlu0 %557
    %559 = vrot.lane.b32.xlu0 %v430, 117
    %v560 = vpop.permute.xlu0 %559
    %561 = vrot.lane.b32.xlu0 %v431, 117
    %v562 = vpop.permute.xlu0 %561
    %563 = vrot.lane.b32.xlu0 %v432, 117
    %v564 = vpop.permute.xlu0 %563
    %569 = vrot.lane.b32.xlu0 %v429, 116
    %v570 = vpop.permute.xlu0 %569
    %571 = vrot.lane.b32.xlu0 %v430, 116
    %v572 = vpop.permute.xlu0 %571
    %573 = vrot.lane.b32.xlu0 %v431, 116
    %v574 = vpop.permute.xlu0 %573
    %575 = vrot.lane.b32.xlu0 %v432, 116
    %v576 = vpop.permute.xlu0 %575
    %581 = vrot.lane.b32.xlu0 %v429, 115
    %v582 = vpop.permute.xlu0 %581
    %583 = vrot.lane.b32.xlu0 %v430, 115
    %v584 = vpop.permute.xlu0 %583
    %585 = vrot.lane.b32.xlu0 %v431, 115
    %v586 = vpop.permute.xlu0 %585
    %587 = vrot.lane.b32.xlu0 %v432, 115
    %v588 = vpop.permute.xlu0 %587
    %593 = vrot.lane.b32.xlu0 %v429, 114
    %v594 = vpop.permute.xlu0 %593
    %595 = vrot.lane.b32.xlu0 %v430, 114
    %v596 = vpop.permute.xlu0 %595
    %597 = vrot.lane.b32.xlu0 %v431, 114
    %v598 = vpop.permute.xlu0 %597
    %599 = vrot.lane.b32.xlu0 %v432, 114
    %v600 = vpop.permute.xlu0 %599
    %605 = vrot.lane.b32.xlu0 %v429, 113
    %v606 = vpop.permute.xlu0 %605
    %607 = vrot.lane.b32.xlu0 %v430, 113
    %v608 = vpop.permute.xlu0 %607
    %609 = vrot.lane.b32.xlu0 %v431, 113
    %v610 = vpop.permute.xlu0 %609
    %611 = vrot.lane.b32.xlu0 %v432, 113
    %v612 = vpop.permute.xlu0 %611
    %v617 = vld [vmem:[%s4] sm:$0xff]
    %v618 = vld [vmem:[%s4 + $0x8] sm:$0xff]
    %v619 = vld [vmem:[%s4 + $0x10] sm:$0xff]
    %v620 = vld [vmem:[%s4 + $0x18] sm:$0xff]
    %v621 = vld [vmem:[%s4 + $0x20] sm:$0xff]
    %v622 = vld [vmem:[%s4 + $0x28] sm:$0xff]
    %v623 = vld [vmem:[%s4 + $0x30] sm:$0xff]
    %v624 = vld [vmem:[%s4 + $0x38] sm:$0xff]
    %v625 = vld [vmem:[%s4 + $0x40] sm:$0xff]
    %v626 = vld [vmem:[%s4 + $0x48] sm:$0xff]
    %v627 = vld [vmem:[%s4 + $0x50] sm:$0xff]
    %v628 = vld [vmem:[%s4 + $0x58] sm:$0xff]
    %v629 = vld [vmem:[%s4 + $0x60] sm:$0xff]
    %v630 = vld [vmem:[%s4 + $0x68] sm:$0xff]
    %v631 = vld [vmem:[%s4 + $0x70] sm:$0xff]
    %v632 = vld [vmem:[%s4 + $0x78] sm:$0xff]
    %v633 = vld [vmem:[%s5] sm:$0xff]
    %v634 = vld [vmem:[%s5 + $0x8] sm:$0xff]
    %v635 = vld [vmem:[%s5 + $0x10] sm:$0xff]
    %v636 = vld [vmem:[%s5 + $0x18] sm:$0xff]
    %638 = vset.pattern.permute.xlu0 0
    %639 = vperm.xlu0 %638, %v633
    %v640 = vpop.permute.xlu0 %639
    %643 = vset.pattern.permute.xlu0 0
    %644 = vperm.xlu0 %643, %v634
    %v645 = vpop.permute.xlu0 %644
    %648 = vset.pattern.permute.xlu0 0
    %649 = vperm.xlu0 %648, %v635
    %v650 = vpop.permute.xlu0 %649
    %653 = vset.pattern.permute.xlu0 0
    %654 = vperm.xlu0 %653, %v636
    %v655 = vpop.permute.xlu0 %654
    %657 = vmatprep.subr.mxu0 0.0
    %658 = vmatpush1.msra.mxu0 %v429
    %659 = vmatprep.subr.mxu0 0.0
    %660 = vmatpush1.msra.mxu0 %v430
    %661 = vmatprep.subr.mxu0 0.0
    %662 = vmatpush1.msra.mxu0 %v431
    %663 = vmatprep.subr.mxu0 0.0
    %664 = vmatpush1.msra.mxu0 %v432
    %665 = vmatprep.subr.mxu0 0.0
    %666 = vmatpush1.msra.mxu0 %v438
    %667 = vmatprep.subr.mxu0 0.0
    %668 = vmatpush1.msra.mxu0 %v440
    %669 = vmatprep.subr.mxu0 0.0
    %670 = vmatpush1.msra.mxu0 %v442
    %671 = vmatprep.subr.mxu0 0.0
    %672 = vmatpush1.msra.mxu0 %v444
    %673 = vmatprep.subr.mxu0 0.0
    %674 = vmatpush1.msra.mxu0 %v450
    %675 = vmatprep.subr.mxu0 0.0
    %676 = vmatpush1.msra.mxu0 %v452
    %677 = vmatprep.subr.mxu0 0.0
    %678 = vmatpush1.msra.mxu0 %v454
    %679 = vmatprep.subr.mxu0 0.0
    %680 = vmatpush1.msra.mxu0 %v456
    %681 = vmatprep.subr.mxu0 0.0
    %682 = vmatpush1.msra.mxu0 %v462
    %683 = vmatprep.subr.mxu0 0.0
    %684 = vmatpush1.msra.mxu0 %v464
    %685 = vmatprep.subr.mxu0 0.0
    %686 = vmatpush1.msra.mxu0 %v466
    %687 = vmatprep.subr.mxu0 0.0
    %688 = vmatpush1.msra.mxu0 %v468
    %689 = vmatprep.subr.mxu0 0.0
    %690 = vmatpush1.msra.mxu0 %v474
    %691 = vmatprep.subr.mxu0 0.0
    %692 = vmatpush1.msra.mxu0 %v476
    %693 = vmatprep.subr.mxu0 0.0
    %694 = vmatpush1.msra.mxu0 %v478
    %695 = vmatprep.subr.mxu0 0.0
    %696 = vmatpush1.msra.mxu0 %v480
    %697 = vmatprep.subr.mxu0 0.0
    %698 = vmatpush1.msra.mxu0 %v486
    %699 = vmatprep.subr.mxu0 0.0
    %700 = vmatpush1.msra.mxu0 %v488
    %701 = vmatprep.subr.mxu0 0.0
    %702 = vmatpush1.msra.mxu0 %v490
    %703 = vmatprep.subr.mxu0 0.0
    %704 = vmatpush1.msra.mxu0 %v492
    %705 = vmatprep.subr.mxu0 0.0
    %706 = vmatpush1.msra.mxu0 %v498
    %707 = vmatprep.subr.mxu0 0.0
    %708 = vmatpush1.msra.mxu0 %v500
    %709 = vmatprep.subr.mxu0 0.0
    %710 = vmatpush1.msra.mxu0 %v502
    %711 = vmatprep.subr.mxu0 0.0
    %712 = vmatpush1.msra.mxu0 %v504
    %713 = vmatprep.subr.mxu0 0.0
    %714 = vmatpush1.msra.mxu0 %v510
    %715 = vmatprep.subr.mxu0 0.0
    %716 = vmatpush1.msra.mxu0 %v512
    %717 = vmatprep.subr.mxu0 0.0
    %718 = vmatpush1.msra.mxu0 %v514
    %719 = vmatprep.subr.mxu0 0.0
    %720 = vmatpush1.msra.mxu0 %v516
    %721 = vmatprep.mubr.f32.mxu0 %v618
    %722 = vmatmul.mubr.f32.gmra.mrb[0].mxu0 %v617
    %v723 = vpop.f32.mrb[0].mxu0
    %v724 = vadd.f32 %v640, %v723
    %v725 = vpop.f32.mrb[0].mxu0
    %726 = vmatprep.mubr.f32.mxu0 %v622
    %727 = vmatmul.mubr.f32.gmra.mrb[0].mxu0 %v621
    %v728 = vpop.f32.mrb[0].mxu0
    %v729 = vadd.f32 %v645, %v728
    %v730 = vpop.f32.mrb[0].mxu0
    %731 = vmatprep.mubr.f32.mxu0 %v626
    %732 = vmatmul.mubr.f32.gmra.mrb[0].mxu0 %v625
    %v733 = vpop.f32.mrb[0].mxu0
    %v734 = vadd.f32 %v650, %v733
    %v735 = vpop.f32.mrb[0].mxu0
    %736 = vmatprep.mubr.f32.mxu0 %v630
    %737 = vmatmul.mubr.f32.gmra.mrb[0].mxu0 %v629
    %v738 = vpop.f32.mrb[0].mxu0
    %v739 = vadd.f32 %v655, %v738
    %v740 = vpop.f32.mrb[0].mxu0
    %741 = vdwg.mxu0
    %742 = vmatprep.subr.mxu0 0.0
    %743 = vmatpush1.msra.mxu0 %v522
    %744 = vmatprep.subr.mxu0 0.0
    %745 = vmatpush1.msra.mxu0 %v524
    %746 = vmatprep.subr.mxu0 0.0
    %747 = vmatpush1.msra.mxu0 %v526
    %748 = vmatprep.subr.mxu0 0.0
    %749 = vmatpush1.msra.mxu0 %v528
    %750 = vmatprep.subr.mxu0 0.0
    %751 = vmatpush1.msra.mxu0 %v534
    %752 = vmatprep.subr.mxu0 0.0
    %753 = vmatpush1.msra.mxu0 %v536
    %754 = vmatprep.subr.mxu0 0.0
    %755 = vmatpush1.msra.mxu0 %v538
    %756 = vmatprep.subr.mxu0 0.0
    %757 = vmatpush1.msra.mxu0 %v540
    %758 = vmatprep.subr.mxu0 0.0
    %759 = vmatpush1.msra.mxu0 %v546
    %760 = vmatprep.subr.mxu0 0.0
    %761 = vmatpush1.msra.mxu0 %v548
    %762 = vmatprep.subr.mxu0 0.0
    %763 = vmatpush1.msra.mxu0 %v550
    %764 = vmatprep.subr.mxu0 0.0
    %765 = vmatpush1.msra.mxu0 %v552
    %766 = vmatprep.subr.mxu0 0.0
    %767 = vmatpush1.msra.mxu0 %v558
    %768 = vmatprep.subr.mxu0 0.0
    %769 = vmatpush1.msra.mxu0 %v560
    %770 = vmatprep.subr.mxu0 0.0
    %771 = vmatpush1.msra.mxu0 %v562
    %772 = vmatprep.subr.mxu0 0.0
    %773 = vmatpush1.msra.mxu0 %v564
    %774 = vmatprep.subr.mxu0 0.0
    %775 = vmatpush1.msra.mxu0 %v570
    %776 = vmatprep.subr.mxu0 0.0
    %777 = vmatpush1.msra.mxu0 %v572
    %778 = vmatprep.subr.mxu0 0.0
    %779 = vmatpush1.msra.mxu0 %v574
    %780 = vmatprep.subr.mxu0 0.0
    %781 = vmatpush1.msra.mxu0 %v576
    %782 = vmatprep.subr.mxu0 0.0
    %783 = vmatpush1.msra.mxu0 %v582
    %784 = vmatprep.subr.mxu0 0.0
    %785 = vmatpush1.msra.mxu0 %v584
    %786 = vmatprep.subr.mxu0 0.0
    %787 = vmatpush1.msra.mxu0 %v586
    %788 = vmatprep.subr.mxu0 0.0
    %789 = vmatpush1.msra.mxu0 %v588
    %790 = vmatprep.subr.mxu0 0.0
    %791 = vmatpush1.msra.mxu0 %v594
    %792 = vmatprep.subr.mxu0 0.0
    %793 = vmatpush1.msra.mxu0 %v596
    %794 = vmatprep.subr.mxu0 0.0
    %795 = vmatpush1.msra.mxu0 %v598
    %796 = vmatprep.subr.mxu0 0.0
    %797 = vmatpush1.msra.mxu0 %v600
    %798 = vmatprep.subr.mxu0 0.0
    %799 = vmatpush1.msra.mxu0 %v606
    %800 = vmatprep.subr.mxu0 0.0
    %801 = vmatpush1.msra.mxu0 %v608
    %802 = vmatprep.subr.mxu0 0.0
    %803 = vmatpush1.msra.mxu0 %v610
    %804 = vmatprep.subr.mxu0 0.0
    %805 = vmatpush1.msra.mxu0 %v612
    %806 = vmatprep.mubr.f32.mxu0 %v620
    %807 = vmatmul.mubr.f32.gmra.mrb[0].mxu0 %v619
    %v808 = vpop.f32.mrb[0].mxu0
    %v809 = vadd.f32 %v724, %v808
    %v810 = vpop.f32.mrb[0].mxu0
    %811 = vmatprep.mubr.f32.mxu0 %v624
    %812 = vmatmul.mubr.f32.gmra.mrb[0].mxu0 %v623
    %v813 = vpop.f32.mrb[0].mxu0
    %v814 = vadd.f32 %v729, %v813
    %v815 = vpop.f32.mrb[0].mxu0
    %816 = vmatprep.mubr.f32.mxu0 %v628
    %817 = vmatmul.mubr.f32.gmra.mrb[0].mxu0 %v627
    %v818 = vpop.f32.mrb[0].mxu0
    %v819 = vadd.f32 %v734, %v818
    %v820 = vpop.f32.mrb[0].mxu0
    %821 = vmatprep.mubr.f32.mxu0 %v632
    %822 = vmatmul.mubr.f32.gmra.mrb[0].mxu0 %v631
    %v823 = vpop.f32.mrb[0].mxu0
    %v824 = vadd.f32 %v739, %v823
    %v825 = vpop.f32.mrb[0].mxu0
    %826 = vdwg.mxu0
    %vm827 = vcmp.gt.f32.partialorder %v809, 0.0
    %vm828 = vcmp.gt.f32.partialorder %v814, 0.0
    %vm829 = vcmp.gt.f32.partialorder %v819, 0.0
    %vm830 = vcmp.gt.f32.partialorder %v824, 0.0
    %v831 = vmin.f32 %v809, 0.0
    %v832 = vmin.f32 %v814, 0.0
    %v833 = vmin.f32 %v819, 0.0
    %v834 = vmin.f32 %v824, 0.0
    %v835 = vmul.f32 %v831, 1.442695
    %v836 = vpow.pop %v835
    %v837 = vmul.f32 %v832, 1.442695
    %v838 = vpow.pop %v837
    %v839 = vmul.f32 %v833, 1.442695
    %v840 = vpow.pop %v839
    %v841 = vmul.f32 %v834, 1.442695
    %v842 = vpow.pop %v841
    %v843 = vsub.f32 %v836, 1.0
    %v844 = vsub.f32 %v838, 1.0
    %v845 = vsub.f32 %v840, 1.0
    %v846 = vsub.f32 %v842, 1.0
    %v847 = vsel %vm827, %v809, %v843
    %v848 = vsel %vm828, %v814, %v844
    %v849 = vsel %vm829, %v819, %v845
    %v850 = vsel %vm830, %v824, %v846
    %v851 = vld [vmem:[%s6] sm:$0xff]
    %v852 = vld [vmem:[%s6 + $0x8] sm:$0xff]
    %v853 = vld [vmem:[%s6 + $0x10] sm:$0xff]
    %v854 = vld [vmem:[%s6 + $0x18] sm:$0xff]
    %vm855 = vcmask 261120
    %v857 = vsel %vm855, %v847, 0
    %v860 = vsel %vm855, %v848, 0
    %v863 = vsel %vm855, %v849, 0
    %v866 = vsel %vm855, %v850, 0
    %868 = vmatprep.subr.mxu0 0.0
    %869 = vmatpush1.msra.mxu0 %v851
    %870 = vmatprep.subr.mxu0 0.0
    %871 = vmatpush1.msra.mxu0 %v852
    %872 = vmatprep.subr.mxu0 0.0
    %873 = vmatpush1.msra.mxu0 %v853
    %874 = vmatprep.subr.mxu0 0.0
    %875 = vmatpush1.msra.mxu0 %v854
    %876 = vmatprep.subr.mxu0 0.0
    %877 = vmatpush1.msra.mxu0 0.0
    %878 = vmatprep.subr.mxu0 0.0
    %879 = vmatpush1.msra.mxu0 0.0
    %880 = vmatprep.subr.mxu0 0.0
    %881 = vmatpush1.msra.mxu0 0.0
    %882 = vmatprep.subr.mxu0 0.0
    %883 = vmatpush1.msra.mxu0 0.0
    %884 = vmatprep.subr.mxu0 0.0
    %885 = vmatpush1.msra.mxu0 0.0
    %886 = vmatprep.subr.mxu0 0.0
    %887 = vmatpush1.msra.mxu0 0.0
    %888 = vmatprep.subr.mxu0 0.0
    %889 = vmatpush1.msra.mxu0 0.0
    %890 = vmatprep.subr.mxu0 0.0
    %891 = vmatpush1.msra.mxu0 0.0
    %892 = vmatprep.subr.mxu0 0.0
    %893 = vmatpush1.msra.mxu0 0.0
    %894 = vmatprep.subr.mxu0 0.0
    %895 = vmatpush1.msra.mxu0 0.0
    %896 = vmatprep.subr.mxu0 0.0
    %897 = vmatpush1.msra.mxu0 0.0
    %898 = vmatprep.subr.mxu0 0.0
    %899 = vmatpush1.msra.mxu0 0.0
    %900 = vmatprep.subr.mxu0 0.0
    %901 = vmatpush1.msra.mxu0 0.0
    %902 = vmatprep.subr.mxu0 0.0
    %903 = vmatpush1.msra.mxu0 0.0
    %904 = vmatprep.subr.mxu0 0.0
    %905 = vmatpush1.msra.mxu0 0.0
    %906 = vmatprep.subr.mxu0 0.0
    %907 = vmatpush1.msra.mxu0 0.0
    %908 = vmatprep.subr.mxu0 0.0
    %909 = vmatpush1.msra.mxu0 0.0
    %910 = vmatprep.subr.mxu0 0.0
    %911 = vmatpush1.msra.mxu0 0.0
    %912 = vmatprep.subr.mxu0 0.0
    %913 = vmatpush1.msra.mxu0 0.0
    %914 = vmatprep.subr.mxu0 0.0
    %915 = vmatpush1.msra.mxu0 0.0
    %916 = vmatprep.subr.mxu0 0.0
    %917 = vmatpush1.msra.mxu0 0.0
    %918 = vmatprep.subr.mxu0 0.0
    %919 = vmatpush1.msra.mxu0 0.0
    %920 = vmatprep.subr.mxu0 0.0
    %921 = vmatpush1.msra.mxu0 0.0
    %922 = vmatprep.subr.mxu0 0.0
    %923 = vmatpush1.msra.mxu0 0.0
    %924 = vmatprep.subr.mxu0 0.0
    %925 = vmatpush1.msra.mxu0 0.0
    %926 = vmatprep.subr.mxu0 0.0
    %927 = vmatpush1.msra.mxu0 0.0
    %928 = vmatprep.subr.mxu0 0.0
    %929 = vmatpush1.msra.mxu0 0.0
    %930 = vmatprep.subr.mxu0 0.0
    %931 = vmatpush1.msra.mxu0 0.0
    %932 = vmatprep.mubr.f32.mxu0 0.0
    %933 = vmatmul.mubr.f32.gmra.mrb[0].mxu0 %v857
    %v934 = vpop.f32.mrb[0].mxu0
    %v935 = vadd.f32 0.0, %v934
    %v936 = vpop.f32.mrb[0].mxu0
    %937 = vmatprep.mubr.f32.mxu0 0.0
    %938 = vmatmul.mubr.f32.gmra.mrb[0].mxu0 %v860
    %v939 = vpop.f32.mrb[0].mxu0
    %v940 = vadd.f32 0.0, %v939
    %v941 = vpop.f32.mrb[0].mxu0
    %942 = vmatprep.mubr.f32.mxu0 0.0
    %943 = vmatmul.mubr.f32.gmra.mrb[0].mxu0 %v863
    %v944 = vpop.f32.mrb[0].mxu0
    %v945 = vadd.f32 0.0, %v944
    %v946 = vpop.f32.mrb[0].mxu0
    %947 = vmatprep.mubr.f32.mxu0 0.0
    %948 = vmatmul.mubr.f32.gmra.mrb[0].mxu0 %v866
    %v949 = vpop.f32.mrb[0].mxu0
    %v950 = vadd.f32 0.0, %v949
    %v951 = vpop.f32.mrb[0].mxu0
    %952 = vdwg.mxu0
    %v953 = vld [vmem:[%s7] sm:$0xff]
    %v954 = vld [vmem:[%s7 + $0x8] sm:$0xff]
    %v955 = vld [vmem:[%s7 + $0x10] sm:$0xff]
    %v956 = vld [vmem:[%s7 + $0x18] sm:$0xff]
    %v957 = vmul.f32 %v935, %v953
    %v958 = vmul.f32 %v940, %v954
    %v959 = vmul.f32 %v945, %v955
    %v960 = vmul.f32 %v950, %v956
    %vm961 = vcmask 31744
    %v962 = vsel %vm961, %v957, 0.0
    %963 = vadd.xlane.f32.xlu0 %v962
    %v964 = vpop.xlane.xlu0 %963
    %v965 = vsel %vm961, %v958, 0.0
    %966 = vadd.xlane.f32.xlu0 %v965
    %v967 = vpop.xlane.xlu0 %966
    %v968 = vsel %vm961, %v959, 0.0
    %969 = vadd.xlane.f32.xlu0 %v968
    %v970 = vpop.xlane.xlu0 %969
    %v971 = vsel %vm961, %v960, 0.0
    %972 = vadd.xlane.f32.xlu0 %v971
    %v973 = vpop.xlane.xlu0 %972
    %s974 = scalar_lea.vmem %s7, 32
    %v975 = vld [vmem:[%s974] sm:$0xff]
    %v976 = vld [vmem:[%s974 + $0x8] sm:$0xff]
    %v977 = vld [vmem:[%s974 + $0x10] sm:$0xff]
    %v978 = vld [vmem:[%s974 + $0x18] sm:$0xff]
    %v979 = vmul.f32 %v935, %v975
    %v980 = vmul.f32 %v940, %v976
    %v981 = vmul.f32 %v945, %v977
    %v982 = vmul.f32 %v950, %v978
    %v983 = vsel %vm961, %v979, 0.0
    %984 = vadd.xlane.f32.xlu0 %v983
    %v985 = vpop.xlane.xlu0 %984
    %v986 = vsel %vm961, %v980, 0.0
    %987 = vadd.xlane.f32.xlu0 %v986
    %v988 = vpop.xlane.xlu0 %987
    %v989 = vsel %vm961, %v981, 0.0
    %990 = vadd.xlane.f32.xlu0 %v989
    %v991 = vpop.xlane.xlu0 %990
    %v992 = vsel %vm961, %v982, 0.0
    %993 = vadd.xlane.f32.xlu0 %v992
    %v994 = vpop.xlane.xlu0 %993
    %vm995 = vcmask 7168
    %v996 = vsel %vm995, %v964, %v985
    %v997 = vsel %vm995, %v967, %v988
    %v998 = vsel %vm995, %v970, %v991
    %v999 = vsel %vm995, %v973, %v994
    %v1000 = vld [vmem:[%s8] sm:$0x3]
    %v1001 = vld [vmem:[%s9] sm:$0x1]
    %v1003 = vlaneseq
    %v1004 = vshrl.u32 %v1003, 7
    %v1005 = vsub.s32 0, %v1004
    %v1006 = vrot.slane %v1001, %v1005
    %v1009 = vsel %vm855, %v1000, 0
    %1011 = vmatprep.subr.mxu0 0.0
    %1012 = vmatpush1.msra.mxu0 %v996
    %1013 = vmatprep.subr.mxu0 0.0
    %1014 = vmatpush1.msra.mxu0 %v997
    %1015 = vmatprep.subr.mxu0 0.0
    %1016 = vmatpush1.msra.mxu0 %v998
    %1017 = vmatprep.subr.mxu0 0.0
    %1018 = vmatpush1.msra.mxu0 %v999
    %1019 = vmatprep.subr.mxu0 0.0
    %1020 = vmatpush1.msra.mxu0 0.0
    %1021 = vmatprep.subr.mxu0 0.0
    %1022 = vmatpush1.msra.mxu0 0.0
    %1023 = vmatprep.subr.mxu0 0.0
    %1024 = vmatpush1.msra.mxu0 0.0
    %1025 = vmatprep.subr.mxu0 0.0
    %1026 = vmatpush1.msra.mxu0 0.0
    %1027 = vmatprep.subr.mxu0 0.0
    %1028 = vmatpush1.msra.mxu0 0.0
    %1029 = vmatprep.subr.mxu0 0.0
    %1030 = vmatpush1.msra.mxu0 0.0
    %1031 = vmatprep.subr.mxu0 0.0
    %1032 = vmatpush1.msra.mxu0 0.0
    %1033 = vmatprep.subr.mxu0 0.0
    %1034 = vmatpush1.msra.mxu0 0.0
    %1035 = vmatprep.subr.mxu0 0.0
    %1036 = vmatpush1.msra.mxu0 0.0
    %1037 = vmatprep.subr.mxu0 0.0
    %1038 = vmatpush1.msra.mxu0 0.0
    %1039 = vmatprep.subr.mxu0 0.0
    %1040 = vmatpush1.msra.mxu0 0.0
    %1041 = vmatprep.subr.mxu0 0.0
    %1042 = vmatpush1.msra.mxu0 0.0
    %1043 = vmatprep.subr.mxu0 0.0
    %1044 = vmatpush1.msra.mxu0 0.0
    %1045 = vmatprep.subr.mxu0 0.0
    %1046 = vmatpush1.msra.mxu0 0.0
    %1047 = vmatprep.subr.mxu0 0.0
    %1048 = vmatpush1.msra.mxu0 0.0
    %1049 = vmatprep.subr.mxu0 0.0
    %1050 = vmatpush1.msra.mxu0 0.0
    %1051 = vmatprep.subr.mxu0 0.0
    %1052 = vmatpush1.msra.mxu0 0.0
    %1053 = vmatprep.subr.mxu0 0.0
    %1054 = vmatpush1.msra.mxu0 0.0
    %1055 = vmatprep.subr.mxu0 0.0
    %1056 = vmatpush1.msra.mxu0 0.0
    %1057 = vmatprep.subr.mxu0 0.0
    %1058 = vmatpush1.msra.mxu0 0.0
    %1059 = vmatprep.subr.mxu0 0.0
    %1060 = vmatpush1.msra.mxu0 0.0
    %1061 = vmatprep.subr.mxu0 0.0
    %1062 = vmatpush1.msra.mxu0 0.0
    %1063 = vmatprep.subr.mxu0 0.0
    %1064 = vmatpush1.msra.mxu0 0.0
    %1065 = vmatprep.subr.mxu0 0.0
    %1066 = vmatpush1.msra.mxu0 0.0
    %1067 = vmatprep.subr.mxu0 0.0
    %1068 = vmatpush1.msra.mxu0 0.0
    %1069 = vmatprep.subr.mxu0 0.0
    %1070 = vmatpush1.msra.mxu0 0.0
    %1071 = vmatprep.subr.mxu0 0.0
    %1072 = vmatpush1.msra.mxu0 0.0
    %1073 = vmatprep.subr.mxu0 0.0
    %1074 = vmatpush1.msra.mxu0 0.0
    %1075 = vmatprep.mubr.f32.mxu0 0.0
    %1076 = vmatmul.mubr.f32.gmra.mrb[0].mxu0 %v1009
    %v1077 = vpop.f32.mrb[0].mxu0
    %v1078 = vadd.f32 %v1006, %v1077
    %v1079 = vpop.f32.mrb[0].mxu0
    %1080 = vdwg.mxu0
    %vm1081 = vcmask 9216
    %v1082 = vsel %vm1081, %v1078, -inf
    %1083 = vmax.xlane.f32.xlu0 %v1082
    %v1084 = vpop.xlane.xlu0 %1083
    %v1085 = vsub.f32 %v1078, %v1084
    %v1086 = vmul.f32 %v1085, 1.442695
    %v1087 = vpow.pop %v1086
    %v1088 = vsel %vm1081, %v1087, 0.0
    %1089 = vadd.xlane.f32.xlu0 %v1088
    %v1090 = vpop.xlane.xlu0 %1089
    %v1091 = vrcp.pop %v1090
    %v1092 = vmul.f32 %v1087, %v1091
    %1093 = vst.msk [vmem:[#allocation2] sm:$0x3] %vm1081, %v1092
    // Predicated region
    $region42: #{eegnet_forward.1} parent=1 // pred_check
      _
    $region43: #{eegnet_forward.1} parent=1 // pred_check_branch
      %1095 = sbr.rel (0) target = $region45
    $region44: #{eegnet_forward.1} parent=1 // pred_region
      %s1097 = ssub.s32 32, 32
      %1098 = vsyncadd [#allocation3], %s1097
      %s1100 = sshll.u32 [#allocation2], 4
      %s1101 = int_to_ptr.vmem [resolvable:$true] %s1100
      %1103 = dma.vmem_to_hbm [thread:$0]  %s1101, 32, %s10, [#allocation3]
    $region45: #{eegnet_forward.1} parent=1 // pred_fallthru
      _
    // Predicated region
    $region46: #{eegnet_forward.1} parent=1 // pred_check
      _
    $region47: #{eegnet_forward.1} parent=1 // pred_check_branch
      %1105 = sbr.rel (0) target = $region49
    $region48: #{eegnet_forward.1} parent=1 // pred_region
      %1106 = dma.done [#allocation3], 32
    $region49: #{eegnet_forward.1} parent=1 // pred_fallthru
      _
    %1107 = vsyncpa [#allocation3], 1

</llo_original>
